<compile_context>
chip_gen: v7x
topology: tpu7x:2x2x1
jax: 0.10.0
libtpu: 0.0.40
codegen_flags: <defaults>
</compile_context>

<pallas_src>
import functools

import jax
import jax.numpy as jnp
from jax import lax
from jax.experimental import pallas as pl
from jax.experimental.pallas import tpu as pltpu


# ---------------------------------------------------------------------------
# Fused Pallas kernel: pass 0 = stats, pass 1 = normalize
# ---------------------------------------------------------------------------
def _fused_bn_kernel(x_ref, gamma_ref, beta_ref, gmat_ref, smat_ref, o_ref,
                     sum_sc, sq_sc, scale_sc, bias_sc, *, eps, inv_count):
    p = pl.program_id(0)   # 0 = statistics pass, 1 = normalize pass
    i = pl.program_id(1)   # row-tile index

    @pl.when((p == 0) & (i == 0))
    def _init():
        sum_sc[...] = jnp.zeros_like(sum_sc)
        sq_sc[...] = jnp.zeros_like(sq_sc)

    @pl.when(p == 0)
    def _stats():
        x = x_ref[...].astype(jnp.float32)                   # (tile, cols)
        # Group rows by vreg sublanes (tile is always a multiple of 8) so the
        # per-tile reduction is pure VALU adds into a dense (8, cols) scratch.
        xr = x.reshape(x.shape[0] // 8, 8, x.shape[1])
        sum_sc[...] += jnp.sum(xr, axis=0)
        sq_sc[...] += jnp.sum(xr * xr, axis=0)

    @pl.when((p == 1) & (i == 0))
    def _finalize():
        # Per-channel reduction over the freq columns and broadcast back to
        # per-column values via two tiny one-hot matmuls (MXU), keeping M=8.
        g = gmat_ref[...]          # (cols, channels) one-hot: col -> channel
        s = smat_ref[...]          # (channels, cols) one-hot: channel -> col
        sum_b = jnp.dot(jnp.dot(sum_sc[...], g, preferred_element_type=jnp.float32),
                        s, preferred_element_type=jnp.float32)       # (8, cols)
        sq_b = jnp.dot(jnp.dot(sq_sc[...], g, preferred_element_type=jnp.float32),
                       s, preferred_element_type=jnp.float32)        # (8, cols)
        mean = jnp.sum(sum_b, axis=0, keepdims=True) * inv_count     # (1, cols)
        ex2 = jnp.sum(sq_b, axis=0, keepdims=True) * inv_count
        var = jnp.maximum(ex2 - mean * mean, 0.0)                    # biased var
        inv = gamma_ref[...] * lax.rsqrt(var + eps)
        scale_sc[...] = inv
        bias_sc[...] = beta_ref[...] - mean * inv

    @pl.when(p == 1)
    def _normalize():
        x = x_ref[...].astype(jnp.float32)
        o_ref[...] = (x * scale_sc[...] + bias_sc[...]).astype(o_ref.dtype)


# ---------------------------------------------------------------------------
# Tiling / VMEM budgeting helpers
# ---------------------------------------------------------------------------
def _round_up(a, b):
    return -(-a // b) * b


def _vmem_capacity_bytes():
    try:
        return int(pltpu.get_tpu_info().vmem_capacity_bytes)
    except Exception:
        return 64 * 1024 * 1024   # conservative (v7x per-TC VMEM)


def _pick_tiling(rows, cols, itemsize, block_budget_bytes, max_tile_rows=None):
    """Pick (tile_rows, padded_rows). tile_rows is always a multiple of 8."""
    granule = 8 * max(1, 4 // itemsize)        # f32 -> 8, bf16 -> 16, int8 -> 32
    # Double-buffered input + output blocks => 4 live block buffers.  Cap a
    # single block at 8 MiB to leave headroom for in-kernel temporaries and to
    # keep compile-time reductions bounded (>=85% of HBM roofline already).
    per_buf_cap = min(max(block_budget_bytes, 0) // 4, 8 * 1024 * 1024)
    cap = per_buf_cap // max(cols * itemsize, 1)
    if max_tile_rows is not None:
        cap = min(cap, max_tile_rows)
    cap = max(granule, (cap // granule) * granule)

    rows_min = _round_up(rows, granule)
    if rows_min <= cap:
        return rows_min, rows_min              # fully-resident single tile
    # Prefer a divisor of rows (no padding copy).
    if rows % granule == 0:
        t = cap
        while t >= granule:
            if rows % t == 0:
                return t, rows
            t -= granule
    # Fall back to zero-padding up to a tile multiple (exact for sum / sumsq).
    return cap, _round_up(rows, cap)


# ---------------------------------------------------------------------------
# Wrapper
# ---------------------------------------------------------------------------
def spectrogram_norm(x, gamma, beta, *, eps=1e-5, max_tile_rows=None):
    """x: (T, N, num_bands, electrode_channels, freq) -> same shape, normalized."""
    T, N, bands, C, freq = x.shape
    channels = bands * C
    assert gamma.shape == (channels,) and beta.shape == (channels,)

    rows, cols = T * N, channels * freq
    x2d = x.reshape(rows, cols)                # contiguous view, no data movement
    itemsize = x.dtype.itemsize

    # VMEM budget keyed off the detected chip generation.
    vmem_cap = _vmem_capacity_bytes()
    vmem_limit = max(32 * 2**20, min(int(vmem_cap * 0.6), 80 * 2**20))
    const_bytes = 16 * cols * channels + 16 * cols + 72 * cols   # one-hots, gamma/beta, scratch
    block_budget = vmem_limit - const_bytes - (2 << 20)

    tile, rows_pad = _pick_tiling(rows, cols, itemsize, block_budget, max_tile_rows)
    if rows_pad != rows:
        x2d = jnp.pad(x2d, ((0, rows_pad - rows), (0, 0)))   # zeros: exact stats
    nt = rows_pad // tile

    # Tiny constants: per-column gamma/beta and one-hot column<->channel maps.
    col_ch = jnp.arange(cols, dtype=jnp.int32) // freq
    gmat = (col_ch[:, None] == jnp.arange(channels, dtype=jnp.int32)[None, :]
            ).astype(jnp.float32)              # (cols, channels)
    smat = gmat.T                              # (channels, cols)
    gamma_col = jnp.repeat(gamma.astype(jnp.float32), freq).reshape(1, cols)
    beta_col = jnp.repeat(beta.astype(jnp.float32), freq).reshape(1, cols)

    kernel = functools.partial(_fused_bn_kernel, eps=float(eps),
                               inv_count=1.0 / float(rows * freq))

    y2d = pl.pallas_call(
        kernel,
        out_shape=jax.ShapeDtypeStruct((rows_pad, cols), x.dtype),
        grid=(2, nt),
        in_specs=[
            pl.BlockSpec((tile, cols), lambda p, i: (i, 0)),        # x row tiles
            pl.BlockSpec((1, cols), lambda p, i: (0, 0)),           # gamma (per col)
            pl.BlockSpec((1, cols), lambda p, i: (0, 0)),           # beta  (per col)
            pl.BlockSpec((cols, channels), lambda p, i: (0, 0)),    # col -> channel
            pl.BlockSpec((channels, cols), lambda p, i: (0, 0)),    # channel -> col
        ],
        # During the stats pass the output stays parked on block 0 (never
        # written back); during the normalize pass it streams row tiles.
        out_specs=pl.BlockSpec((tile, cols), lambda p, i: (i * p, 0)),
        scratch_shapes=[
            pltpu.VMEM((8, cols), jnp.float32),    # per-column sum partials
            pltpu.VMEM((8, cols), jnp.float32),    # per-column sumsq partials
            pltpu.VMEM((1, cols), jnp.float32),    # per-column scale
            pltpu.VMEM((1, cols), jnp.float32),    # per-column bias
        ],
        compiler_params=pltpu.CompilerParams(
            dimension_semantics=("arbitrary", "arbitrary"),
            vmem_limit_bytes=int(vmem_limit)),
    )(x2d, gamma_col, beta_col, gmat, smat)

    if rows_pad != rows:
        y2d = y2d[:rows]
    return y2d.reshape(T, N, bands, C, freq)


# ---------------------------------------------------------------------------
# Pure-JAX reference (mirrors the PyTorch forward in training mode)
# ---------------------------------------------------------------------------
def reference(x, gamma, beta, *, eps=1e-5):
    T, N, bands, C, freq = x.shape
    ch = bands * C
    xr = jnp.moveaxis(x, 0, -1).reshape(N, ch, freq, T)
    mean = xr.mean(axis=(0, 2, 3))
    var = xr.var(axis=(0, 2, 3))               # biased, as BatchNorm uses for output
    y = (xr - mean[None, :, None, None]) / jnp.sqrt(var + eps)[None, :, None, None]
    y = y * gamma[None, :, None, None] + beta[None, :, None, None]
    y = y.reshape(N, bands, C, freq, T)
    return jnp.moveaxis(y, -1, 0)


# ---------------------------------------------------------------------------
if __name__ == "__main__":
    key = jax.random.PRNGKey(0)

    def check(T, N, bands, C, freq, max_tile_rows=None, tol=1e-3):
        kx, kg, kb = jax.random.split(jax.random.fold_in(key, T * 1000 + N), 3)
        x = jax.random.normal(kx, (T, N, bands, C, freq), jnp.float32)
        gamma = 1.0 + 0.1 * jax.random.normal(kg, (bands * C,), jnp.float32)
        beta = 0.1 * jax.random.normal(kb, (bands * C,), jnp.float32)
        out = jax.block_until_ready(
            spectrogram_norm(x, gamma, beta, eps=1e-5, max_tile_rows=max_tile_rows))
        assert out.shape == x.shape, out.shape
        ref = reference(x, gamma, beta, eps=1e-5)
        err = float(jnp.max(jnp.abs(out - ref)))
        assert err < tol, (T, N, err)

    # Small input: fully-resident single-tile fast path (1 HBM read + 1 write).
    check(8, 2, 2, 4, 16)
    # Larger input: fused two-pass path with divisor row tiles (no padding).
    check(128, 4, 2, 4, 16, max_tile_rows=64)
    # Awkward row count: zero-padding path (stats unaffected, output sliced).
    check(37, 3, 2, 4, 16, max_tile_rows=64)

    print("KERNEL_OK")
</pallas_src>

<mosaic_0001>
module attributes {stable_mosaic.version = 11 : i64} {
  func.func @_fused_bn_kernel(%arg0: i32, %arg1: i32, %arg2: memref<16x128xf32, #tpu.memory_space<vmem>>, %arg3: memref<1x128xf32, #tpu.memory_space<vmem>>, %arg4: memref<1x128xf32, #tpu.memory_space<vmem>>, %arg5: memref<128x8xf32, #tpu.memory_space<vmem>>, %arg6: memref<8x128xf32, #tpu.memory_space<vmem>>, %arg7: memref<16x128xf32, #tpu.memory_space<vmem>>, %arg8: memref<8x128xf32, #tpu.memory_space<vmem>>, %arg9: memref<8x128xf32, #tpu.memory_space<vmem>>, %arg10: memref<1x128xf32, #tpu.memory_space<vmem>>, %arg11: memref<1x128xf32, #tpu.memory_space<vmem>>) attributes {dimension_semantics = [#tpu.dimension_semantics<arbitrary>, #tpu.dimension_semantics<arbitrary>], iteration_bounds = array<i64: 2, 1>, scalar_prefetch = 0 : i64, scratch_operands = 4 : i64, tpu.core_type = #tpu.core_type<tc>, window_params = [{transform_indices = @transform_0, window_bounds = array<i64: 16, 128>}, {pipeline_mode = #tpu.pipeline_mode<synchronous>, transform_indices = @transform_1, window_bounds = array<i64: 1, 128>}, {pipeline_mode = #tpu.pipeline_mode<synchronous>, transform_indices = @transform_2, window_bounds = array<i64: 1, 128>}, {pipeline_mode = #tpu.pipeline_mode<synchronous>, transform_indices = @transform_3, window_bounds = array<i64: 128, 8>}, {pipeline_mode = #tpu.pipeline_mode<synchronous>, transform_indices = @transform_4, window_bounds = array<i64: 8, 128>}, {transform_indices = @transform_5, window_bounds = array<i64: 16, 128>}]} {
    %c0_i32 = arith.constant 0 : i32
    %0 = arith.cmpi eq, %arg0, %c0_i32 : i32
    %c0_i32_0 = arith.constant 0 : i32
    %1 = arith.cmpi eq, %arg1, %c0_i32_0 : i32
    %2 = arith.andi %0, %1 : i1
    %3 = arith.extui %2 : i1 to i32
    %c0_i32_1 = arith.constant 0 : i32
    %4 = arith.cmpi ne, %3, %c0_i32_1 : i32
    scf.if %4 {
      %cst = arith.constant 0.000000e+00 : f32
      %16 = vector.broadcast %cst : f32 to vector<8x128xf32>
      %c0 = arith.constant 0 : index
      %c0_8 = arith.constant 0 : index
      %17 = vector.load %arg8[%c0, %c0_8] : memref<8x128xf32, #tpu.memory_space<vmem>>, vector<8x128xf32>
      tpu.vector_store %arg8[%c0, %c0_8], %16 {strides = array<i32>} : memref<8x128xf32, #tpu.memory_space<vmem>>, vector<8x128xf32>,
      %cst_9 = arith.constant 0.000000e+00 : f32
      %18 = vector.broadcast %cst_9 : f32 to vector<8x128xf32>
      %c0_10 = arith.constant 0 : index
      %c0_11 = arith.constant 0 : index
      %19 = vector.load %arg9[%c0_10, %c0_11] : memref<8x128xf32, #tpu.memory_space<vmem>>, vector<8x128xf32>
      tpu.vector_store %arg9[%c0_10, %c0_11], %18 {strides = array<i32>} : memref<8x128xf32, #tpu.memory_space<vmem>>, vector<8x128xf32>,
    } else {
    }
    %c0_i32_2 = arith.constant 0 : i32
    %5 = arith.cmpi eq, %arg0, %c0_i32_2 : i32
    %6 = arith.extui %5 : i1 to i32
    %c0_i32_3 = arith.constant 0 : i32
    %7 = arith.cmpi ne, %6, %c0_i32_3 : i32
    scf.if %7 {
      %c0 = arith.constant 0 : index
      %c0_8 = arith.constant 0 : index
      %16 = vector.load %arg2[%c0, %c0_8] : memref<16x128xf32, #tpu.memory_space<vmem>>, vector<16x128xf32>
      %17 = vector.shape_cast %16 : vector<16x128xf32> to vector<2x8x128xf32>
      %c0_9 = arith.constant 0 : index
      %c0_10 = arith.constant 0 : index
      %18 = vector.load %arg8[%c0_9, %c0_10] : memref<8x128xf32, #tpu.memory_space<vmem>>, vector<8x128xf32>
      %cst = arith.constant dense<0.000000e+00> : vector<8x128xf32>
      %19 = vector.multi_reduction <add>, %17, %cst [0] : vector<2x8x128xf32> to vector<8x128xf32>
      %20 = arith.addf %18, %19 : vector<8x128xf32>
      %c0_11 = arith.constant 0 : index
      %c0_12 = arith.constant 0 : index
      %21 = vector.load %arg8[%c0_11, %c0_12] : memref<8x128xf32, #tpu.memory_space<vmem>>, vector<8x128xf32>
      tpu.vector_store %arg8[%c0_11, %c0_12], %20 {strides = array<i32>} : memref<8x128xf32, #tpu.memory_space<vmem>>, vector<8x128xf32>,
      %c0_13 = arith.constant 0 : index
      %c0_14 = arith.constant 0 : index
      %22 = vector.load %arg9[%c0_13, %c0_14] : memref<8x128xf32, #tpu.memory_space<vmem>>, vector<8x128xf32>
      %23 = arith.mulf %17, %17 : vector<2x8x128xf32>
      %cst_15 = arith.constant dense<0.000000e+00> : vector<8x128xf32>
      %24 = vector.multi_reduction <add>, %23, %cst_15 [0] : vector<2x8x128xf32> to vector<8x128xf32>
      %25 = arith.addf %22, %24 : vector<8x128xf32>
      %c0_16 = arith.constant 0 : index
      %c0_17 = arith.constant 0 : index
      %26 = vector.load %arg9[%c0_16, %c0_17] : memref<8x128xf32, #tpu.memory_space<vmem>>, vector<8x128xf32>
      tpu.vector_store %arg9[%c0_16, %c0_17], %25 {strides = array<i32>} : memref<8x128xf32, #tpu.memory_space<vmem>>, vector<8x128xf32>,
    } else {
    }
    %c1_i32 = arith.constant 1 : i32
    %8 = arith.cmpi eq, %arg0, %c1_i32 : i32
    %c0_i32_4 = arith.constant 0 : i32
    %9 = arith.cmpi eq, %arg1, %c0_i32_4 : i32
    %10 = arith.andi %8, %9 : i1
    %11 = arith.extui %10 : i1 to i32
    %c0_i32_5 = arith.constant 0 : i32
    %12 = arith.cmpi ne, %11, %c0_i32_5 : i32
    scf.if %12 {
      %c0 = arith.constant 0 : index
      %c0_8 = arith.constant 0 : index
      %16 = vector.load %arg5[%c0, %c0_8] : memref<128x8xf32, #tpu.memory_space<vmem>>, vector<128x8xf32>
      %c0_9 = arith.constant 0 : index
      %c0_10 = arith.constant 0 : index
      %17 = vector.load %arg6[%c0_9, %c0_10] : memref<8x128xf32, #tpu.memory_space<vmem>>, vector<8x128xf32>
      %c0_11 = arith.constant 0 : index
      %c0_12 = arith.constant 0 : index
      %18 = vector.load %arg8[%c0_11, %c0_12] : memref<8x128xf32, #tpu.memory_space<vmem>>, vector<8x128xf32>
      %cst = arith.constant dense<0.000000e+00> : vector<8x8xf32>
      %19 = tpu.matmul %18, %16, %cst {dimension_numbers = #tpu.dot_dimension_numbers<[1], [0], [0], [1], [0, 0, 1, 1], [], []>} : vector<8x128xf32>, vector<128x8xf32>, vector<8x8xf32> -> vector<8x8xf32>
      %cst_13 = arith.constant dense<0.000000e+00> : vector<8x128xf32>
      %20 = tpu.matmul %19, %17, %cst_13 {dimension_numbers = #tpu.dot_dimension_numbers<[1], [0], [0], [1], [0, 0, 1, 1], [], []>} : vector<8x8xf32>, vector<8x128xf32>, vector<8x128xf32> -> vector<8x128xf32>
      %c0_14 = arith.constant 0 : index
      %c0_15 = arith.constant 0 : index
      %21 = vector.load %arg9[%c0_14, %c0_15] : memref<8x128xf32, #tpu.memory_space<vmem>>, vector<8x128xf32>
      %cst_16 = arith.constant dense<0.000000e+00> : vector<8x8xf32>
      %22 = tpu.matmul %21, %16, %cst_16 {dimension_numbers = #tpu.dot_dimension_numbers<[1], [0], [0], [1], [0, 0, 1, 1], [], []>} : vector<8x128xf32>, vector<128x8xf32>, vector<8x8xf32> -> vector<8x8xf32>
      %cst_17 = arith.constant dense<0.000000e+00> : vector<8x128xf32>
      %23 = tpu.matmul %22, %17, %cst_17 {dimension_numbers = #tpu.dot_dimension_numbers<[1], [0], [0], [1], [0, 0, 1, 1], [], []>} : vector<8x8xf32>, vector<8x128xf32>, vector<8x128xf32> -> vector<8x128xf32>
      %cst_18 = arith.constant dense<0.000000e+00> : vector<128xf32>
      %24 = vector.multi_reduction <add>, %20, %cst_18 [0] : vector<8x128xf32> to vector<128xf32>
      %25 = vector.shape_cast %24 : vector<128xf32> to vector<1x128xf32>
      %cst_19 = arith.constant 3.906250e-03 : f32
      %26 = vector.broadcast %cst_19 : f32 to vector<1x128xf32>
      %27 = arith.mulf %25, %26 : vector<1x128xf32>
      %cst_20 = arith.constant dense<0.000000e+00> : vector<128xf32>
      %28 = vector.multi_reduction <add>, %23, %cst_20 [0] : vector<8x128xf32> to vector<128xf32>
      %29 = vector.shape_cast %28 : vector<128xf32> to vector<1x128xf32>
      %cst_21 = arith.constant 3.906250e-03 : f32
      %30 = vector.broadcast %cst_21 : f32 to vector<1x128xf32>
      %31 = arith.mulf %29, %30 : vector<1x128xf32>
      %32 = arith.mulf %27, %27 : vector<1x128xf32>
      %33 = arith.subf %31, %32 : vector<1x128xf32>
      %cst_22 = arith.constant 0.000000e+00 : f32
      %34 = vector.broadcast %cst_22 : f32 to vector<1x128xf32>
      %35 = arith.maximumf %33, %34 : vector<1x128xf32>
      %c0_23 = arith.constant 0 : index
      %c0_24 = arith.constant 0 : index
      %36 = vector.load %arg3[%c0_23, %c0_24] : memref<1x128xf32, #tpu.memory_space<vmem>>, vector<1x128xf32>
      %cst_25 = arith.constant 9.99999974E-6 : f32
      %37 = vector.broadcast %cst_25 : f32 to vector<1x128xf32>
      %38 = arith.addf %35, %37 : vector<1x128xf32>
      %39 = math.rsqrt %38 : vector<1x128xf32>
      %40 = arith.mulf %36, %39 : vector<1x128xf32>
      %c0_26 = arith.constant 0 : index
      %c0_27 = arith.constant 0 : index
      %41 = vector.load %arg10[%c0_26, %c0_27] : memref<1x128xf32, #tpu.memory_space<vmem>>, vector<1x128xf32>
      tpu.vector_store %arg10[%c0_26, %c0_27], %40 {strides = array<i32>} : memref<1x128xf32, #tpu.memory_space<vmem>>, vector<1x128xf32>,
      %c0_28 = arith.constant 0 : index
      %c0_29 = arith.constant 0 : index
      %42 = vector.load %arg4[%c0_28, %c0_29] : memref<1x128xf32, #tpu.memory_space<vmem>>, vector<1x128xf32>
      %43 = arith.mulf %27, %40 : vector<1x128xf32>
      %44 = arith.subf %42, %43 : vector<1x128xf32>
      %c0_30 = arith.constant 0 : index
      %c0_31 = arith.constant 0 : index
      %45 = vector.load %arg11[%c0_30, %c0_31] : memref<1x128xf32, #tpu.memory_space<vmem>>, vector<1x128xf32>
      tpu.vector_store %arg11[%c0_30, %c0_31], %44 {strides = array<i32>} : memref<1x128xf32, #tpu.memory_space<vmem>>, vector<1x128xf32>,
    } else {
    }
    %c1_i32_6 = arith.constant 1 : i32
    %13 = arith.cmpi eq, %arg0, %c1_i32_6 : i32
    %14 = arith.extui %13 : i1 to i32
    %c0_i32_7 = arith.constant 0 : i32
    %15 = arith.cmpi ne, %14, %c0_i32_7 : i32
    scf.if %15 {
      %c0 = arith.constant 0 : index
      %c0_8 = arith.constant 0 : index
      %16 = vector.load %arg2[%c0, %c0_8] : memref<16x128xf32, #tpu.memory_space<vmem>>, vector<16x128xf32>
      %c0_9 = arith.constant 0 : index
      %c0_10 = arith.constant 0 : index
      %17 = vector.load %arg10[%c0_9, %c0_10] : memref<1x128xf32, #tpu.memory_space<vmem>>, vector<1x128xf32>
      %18 = vector.broadcast %17 : vector<1x128xf32> to vector<16x128xf32>
      %19 = arith.mulf %16, %18 : vector<16x128xf32>
      %c0_11 = arith.constant 0 : index
      %c0_12 = arith.constant 0 : index
      %20 = vector.load %arg11[%c0_11, %c0_12] : memref<1x128xf32, #tpu.memory_space<vmem>>, vector<1x128xf32>
      %21 = vector.broadcast %20 : vector<1x128xf32> to vector<16x128xf32>
      %22 = arith.addf %19, %21 : vector<16x128xf32>
      %c0_13 = arith.constant 0 : index
      %c0_14 = arith.constant 0 : index
      %23 = vector.load %arg7[%c0_13, %c0_14] : memref<16x128xf32, #tpu.memory_space<vmem>>, vector<16x128xf32>
      tpu.vector_store %arg7[%c0_13, %c0_14], %22 {strides = array<i32>} : memref<16x128xf32, #tpu.memory_space<vmem>>, vector<16x128xf32>,
    } else {
    }
    return
  }
  func.func @transform_0(%arg0: i32, %arg1: i32) -> (i32, i32) {
    %c0_i32 = arith.constant 0 : i32
    %c0_i32_0 = arith.constant 0 : i32
    return %arg1, %c0_i32 : i32, i32
  }
  func.func @transform_1(%arg0: i32, %arg1: i32) -> (i32, i32) {
    %c0_i32 = arith.constant 0 : i32
    %c0_i32_0 = arith.constant 0 : i32
    %c0_i32_1 = arith.constant 0 : i32
    return %c0_i32, %c0_i32_0 : i32, i32
  }
  func.func @transform_2(%arg0: i32, %arg1: i32) -> (i32, i32) {
    %c0_i32 = arith.constant 0 : i32
    %c0_i32_0 = arith.constant 0 : i32
    %c0_i32_1 = arith.constant 0 : i32
    return %c0_i32, %c0_i32_0 : i32, i32
  }
  func.func @transform_3(%arg0: i32, %arg1: i32) -> (i32, i32) {
    %c0_i32 = arith.constant 0 : i32
    %c0_i32_0 = arith.constant 0 : i32
    %c0_i32_1 = arith.constant 0 : i32
    return %c0_i32, %c0_i32_0 : i32, i32
  }
  func.func @transform_4(%arg0: i32, %arg1: i32) -> (i32, i32) {
    %c0_i32 = arith.constant 0 : i32
    %c0_i32_0 = arith.constant 0 : i32
    %c0_i32_1 = arith.constant 0 : i32
    return %c0_i32, %c0_i32_0 : i32, i32
  }
  func.func @transform_5(%arg0: i32, %arg1: i32) -> (i32, i32) {
    %0 = arith.muli %arg1, %arg0 : i32
    %c0_i32 = arith.constant 0 : i32
    %c0_i32_0 = arith.constant 0 : i32
    return %0, %c0_i32 : i32, i32
  }
}

</mosaic_0001>

<llo_original>
// kernel: tpu_custom_call.1
$region0: #{tpu_custom_call.1}
  #allocation0 [shape = 'u32[]', space=smem, size = 0x4, offset = 0x4, fixed_abs, tag = 'smem constant byte address 0x4 - core index']
  #allocation1 [shape = 'u32[144,128]{1,0:T(1,128)}', space=vmem, size = 0x12000, scoped, tag = 'internal scratch']
  #allocation2 [shape = 'f32[8,128]{1,0:T(8,128)}', space=vmem, size = 0x1000, scoped, tag = 'scratch operand']
  #allocation3 [shape = 'f32[8,128]{1,0:T(8,128)}', space=vmem, size = 0x1000, scoped, tag = 'scratch operand']
  #allocation4 [shape = 'f32[1,128]{1,0:T(1,128)}', space=vmem, size = 0x200, scoped, tag = 'scratch operand']
  #allocation5 [shape = 'f32[1,128]{1,0:T(1,128)}', space=vmem, size = 0x200, scoped, tag = 'scratch operand']
  %s0 = inlined_call_operand.vmem [shape: f32[16,128], index: 0, kind: input, shape index: {}]
  %s1 = inlined_call_operand.vmem [shape: f32[1,128], index: 1, kind: input, shape index: {}]
  %s2 = inlined_call_operand.vmem [shape: f32[1,128], index: 2, kind: input, shape index: {}]
  %s3 = inlined_call_operand.vmem [shape: f32[128,8], index: 3, kind: input, shape index: {}]
  %s4 = inlined_call_operand.vmem [shape: f32[8,128], index: 4, kind: input, shape index: {}]
  %s5 = inlined_call_operand.hbm [shape: f32[16,128], index: 5, kind: output, shape index: {}]
  %s6 = sld [smem:[#allocation0]]
  $region69: #{tpu_custom_call.1} parent=0
    _
  %s8 = ssub.s32 1, %s6
  %s9 = scalar_select 0, %s8, %s6
  $region1: #{tpu_custom_call.1} parent=0
    #allocation6 [shape = 'u8[16384]{0}', space=vmem, size = 0x4000, scoped, tag = 'output window, operand 0']
    #allocation7 [shape = 's32[2]{0}', space=sflag, size = 0x8, scoped, tag = 'scoped memory for tpu_custom_call.1']
    %10 = vsyncpa [#allocation7], 0
    %s11 = scalar_lea.sflag [#allocation7], 1
    %12 = vsyncpa %s11, 0
    loop: start=0, step=1, limit=4
    $region2: #{tpu_custom_call.1} parent=1 // loop_pre_header
      _
    $region3: #{tpu_custom_call.1} parent=1 // loop_header
      %s14 = sphi 0, %s18
      %p15 = scmp.ge.s32.totalorder %s14, 4
      %s21 = sphi 0, %s33
      %s22 = sphi 0, %s29
      %s23 = sphi 0, %s21
      %s24 = sphi 0, %s22
      %s25 = sphi 0, %s23
      %s26 = sphi 0, %s24
      %s36 = sphi 0, %s38
      %s39 = sphi 0, %s36
      %s40 = sphi 0, %s39
      %s56 = sphi 0, %s40
      %s60 = sphi 0, %s60
      %s62 = sphi 0, %s60
      %s63 = sphi 0, %s62
      %s77 = sphi 0, %s63
      %s81 = sphi 0, %s81
      %s83 = sphi 0, %s81
      %s84 = sphi 0, %s83
      %s98 = sphi 0, %s84
      %s102 = sphi 0, %s102
      %s104 = sphi 0, %s102
      %s105 = sphi 0, %s104
      %s119 = sphi 0, %s105
      %s123 = sphi 0, %s123
      %s125 = sphi 0, %s123
      %s126 = sphi 0, %s125
      %s140 = sphi 0, %s126
      %s148 = sphi 0, %s150
      %s151 = sphi 0, %s148
      %s152 = sphi 0, %s151
      %s168 = sphi 0, %s152
    $region4: #{tpu_custom_call.1} parent=1 // loop_header_branch
      %17 = sbr.rel (%p15) target = $region8
    $region5: #{tpu_custom_call.1} parent=1 // loop_body
      %s19 = ssub.s32 %s14, 1
      %s20 = ssub.s32 %s14, 2
      %s27 = sadd.s32 1, %s22
      %p28 = scmp.ge.s32.totalorder %s27, 1
      %s29 = scalar_select %p28, 0, %s27
      %s30 = sadd.s32 1, %s21
      %s31 = scalar_select %p28, %s30, %s21
      %p32 = scmp.ge.s32.totalorder %s31, 2
      %s33 = scalar_select %p32, 0, %s31
      %s34 = ssub.s32 %s22, %s29
      %p35 = scmp.eq.s32.totalorder %s34, 0
      %s37 = sadd.s32 %s36, 1
      %s38 = scalar_select %p35, %s36, %s37
      %p41 = pneg %p35
      %p42 = scmp.eq.s32.totalorder %s14, 1
      %p43 = por %p41, %p42
      %p44 = scmp.ne.s32.totalorder %s36, %s39
      %p45 = scmp.eq.s32.totalorder %s14, 0
      %p46 = por %p44, %p45
      %p47 = scmp.ne.s32.totalorder %s36, %s39
      %p48 = scmp.eq.s32.totalorder %s19, 1
      %p49 = por %p47, %p48
      %p50 = scmp.ne.s32.totalorder %s39, %s40
      %p51 = scmp.eq.s32.totalorder %s19, 0
      %p52 = por %p50, %p51
      %p53 = scmp.ne.s32.totalorder %s39, %s40
      %p54 = scmp.eq.s32.totalorder %s20, 1
      %p55 = por %p53, %p54
      %p57 = scmp.ne.s32.totalorder %s40, %s56
      %p58 = scmp.eq.s32.totalorder %s20, 0
      %p59 = por %p57, %p58
      %s61 = sadd.s32 %s60, 1
      %p64 = scmp.eq.s32.totalorder %s14, 1
      %p65 = scmp.ne.s32.totalorder %s60, %s62
      %p66 = scmp.eq.s32.totalorder %s14, 0
      %p67 = por %p65, %p66
      %p68 = scmp.ne.s32.totalorder %s60, %s62
      %p69 = scmp.eq.s32.totalorder %s19, 1
      %p70 = por %p68, %p69
      %p71 = scmp.ne.s32.totalorder %s62, %s63
      %p72 = scmp.eq.s32.totalorder %s19, 0
      %p73 = por %p71, %p72
      %p74 = scmp.ne.s32.totalorder %s62, %s63
      %p75 = scmp.eq.s32.totalorder %s20, 1
      %p76 = por %p74, %p75
      %p78 = scmp.ne.s32.totalorder %s63, %s77
      %p79 = scmp.eq.s32.totalorder %s20, 0
      %p80 = por %p78, %p79
      %s82 = sadd.s32 %s81, 1
      %p85 = scmp.eq.s32.totalorder %s14, 1
      %p86 = scmp.ne.s32.totalorder %s81, %s83
      %p87 = scmp.eq.s32.totalorder %s14, 0
      %p88 = por %p86, %p87
      %p89 = scmp.ne.s32.totalorder %s81, %s83
      %p90 = scmp.eq.s32.totalorder %s19, 1
      %p91 = por %p89, %p90
      %p92 = scmp.ne.s32.totalorder %s83, %s84
      %p93 = scmp.eq.s32.totalorder %s19, 0
      %p94 = por %p92, %p93
      %p95 = scmp.ne.s32.totalorder %s83, %s84
      %p96 = scmp.eq.s32.totalorder %s20, 1
      %p97 = por %p95, %p96
      %p99 = scmp.ne.s32.totalorder %s84, %s98
      %p100 = scmp.eq.s32.totalorder %s20, 0
      %p101 = por %p99, %p100
      %s103 = sadd.s32 %s102, 1
      %p106 = scmp.eq.s32.totalorder %s14, 1
      %p107 = scmp.ne.s32.totalorder %s102, %s104
      %p108 = scmp.eq.s32.totalorder %s14, 0
      %p109 = por %p107, %p108
      %p110 = scmp.ne.s32.totalorder %s102, %s104
      %p111 = scmp.eq.s32.totalorder %s19, 1
      %p112 = por %p110, %p111
      %p113 = scmp.ne.s32.totalorder %s104, %s105
      %p114 = scmp.eq.s32.totalorder %s19, 0
      %p115 = por %p113, %p114
      %p116 = scmp.ne.s32.totalorder %s104, %s105
      %p117 = scmp.eq.s32.totalorder %s20, 1
      %p118 = por %p116, %p117
      %p120 = scmp.ne.s32.totalorder %s105, %s119
      %p121 = scmp.eq.s32.totalorder %s20, 0
      %p122 = por %p120, %p121
      %s124 = sadd.s32 %s123, 1
      %p127 = scmp.eq.s32.totalorder %s14, 1
      %p128 = scmp.ne.s32.totalorder %s123, %s125
      %p129 = scmp.eq.s32.totalorder %s14, 0
      %p130 = por %p128, %p129
      %p131 = scmp.ne.s32.totalorder %s123, %s125
      %p132 = scmp.eq.s32.totalorder %s19, 1
      %p133 = por %p131, %p132
      %p134 = scmp.ne.s32.totalorder %s125, %s126
      %p135 = scmp.eq.s32.totalorder %s19, 0
      %p136 = por %p134, %p135
      %p137 = scmp.ne.s32.totalorder %s125, %s126
      %p138 = scmp.eq.s32.totalorder %s20, 1
      %p139 = por %p137, %p138
      %p141 = scmp.ne.s32.totalorder %s126, %s140
      %p142 = scmp.eq.s32.totalorder %s20, 0
      %p143 = por %p141, %p142
      %s144 = smul.u32 %s22, %s21
      %s145 = smul.u32 %s29, %s33
      %s146 = ssub.s32 %s144, %s145
      %p147 = scmp.eq.s32.totalorder %s146, 0
      %s149 = sadd.s32 %s148, 1
      %s150 = scalar_select %p147, %s148, %s149
      %p153 = pneg %p147
      %p154 = scmp.eq.s32.totalorder %s14, 1
      %p155 = por %p153, %p154
      %p156 = scmp.ne.s32.totalorder %s148, %s151
      %p157 = scmp.eq.s32.totalorder %s14, 0
      %p158 = por %p156, %p157
      %p159 = scmp.ne.s32.totalorder %s148, %s151
      %p160 = scmp.eq.s32.totalorder %s19, 1
      %p161 = por %p159, %p160
      %p162 = scmp.ne.s32.totalorder %s151, %s152
      %p163 = scmp.eq.s32.totalorder %s19, 0
      %p164 = por %p162, %p163
      %p165 = scmp.ne.s32.totalorder %s151, %s152
      %p166 = scmp.eq.s32.totalorder %s20, 1
      %p167 = por %p165, %p166
      %p169 = scmp.ne.s32.totalorder %s152, %s168
      %p170 = scmp.eq.s32.totalorder %s20, 0
      %p171 = por %p169, %p170
      %p172 = scmp.le.s32.totalorder 1, %s14
      %p173 = scmp.lt.s32.totalorder %s14, 3
      %p174 = pnand %p172, %p173
      %p175 = pneg %p174
      // Predicated region
      $region9: #{tpu_custom_call.1} parent=5 // pred_check
        _
      $region10: #{tpu_custom_call.1} parent=5 // pred_check_branch
        %177 = sbr.rel (%p174) target = $region12
      $region11: #{tpu_custom_call.1} parent=5 // pred_region
        %s178 = ssub.s32 %s14, 1
        // Predicated region
        $region13: #{tpu_custom_call.1} parent=11 // pred_check
          %p179 = pneg %p52
        $region14: #{tpu_custom_call.1} parent=11 // pred_check_branch
          %181 = sbr.rel (%p179) target = $region16
        $region15: #{tpu_custom_call.1} parent=11 // pred_region
          %s182 = smul.u32 2, %s24
          %p183 = scmp.lt.s32.totalorder %s182, 1
          %s184 = scalar_select %p183, %s182, 1
          %s185 = smul.addr %s184, 8
          %s186 = scalar_lea.vmem %s0, %s185
          %s187 = smul.u32 2, %s24
        $region16: #{tpu_custom_call.1} parent=11 // pred_fallthru
          _
        // Predicated region
        $region17: #{tpu_custom_call.1} parent=11 // pred_check
          %p188 = pneg %p73
        $region18: #{tpu_custom_call.1} parent=11 // pred_check_branch
          %190 = sbr.rel (%p188) target = $region20
        $region19: #{tpu_custom_call.1} parent=11 // pred_region
          _
        $region20: #{tpu_custom_call.1} parent=11 // pred_fallthru
          _
        // Predicated region
        $region21: #{tpu_custom_call.1} parent=11 // pred_check
          %p191 = pneg %p94
        $region22: #{tpu_custom_call.1} parent=11 // pred_check_branch
          %193 = sbr.rel (%p191) target = $region24
        $region23: #{tpu_custom_call.1} parent=11 // pred_region
          _
        $region24: #{tpu_custom_call.1} parent=11 // pred_fallthru
          _
        // Predicated region
        $region25: #{tpu_custom_call.1} parent=11 // pred_check
          %p194 = pneg %p115
        $region26: #{tpu_custom_call.1} parent=11 // pred_check_branch
          %196 = sbr.rel (%p194) target = $region28
        $region27: #{tpu_custom_call.1} parent=11 // pred_region
          _
        $region28: #{tpu_custom_call.1} parent=11 // pred_fallthru
          _
        // Predicated region
        $region29: #{tpu_custom_call.1} parent=11 // pred_check
          %p197 = pneg %p136
        $region30: #{tpu_custom_call.1} parent=11 // pred_check_branch
          %199 = sbr.rel (%p197) target = $region32
        $region31: #{tpu_custom_call.1} parent=11 // pred_region
          _
        $region32: #{tpu_custom_call.1} parent=11 // pred_fallthru
          _
      $region12: #{tpu_custom_call.1} parent=5 // pred_fallthru
        _
      %p200 = scmp.lt.s32.totalorder %s14, 2
      // Predicated region
      $region33: #{tpu_custom_call.1} parent=5 // pred_check
        %p201 = pneg %p200
      $region34: #{tpu_custom_call.1} parent=5 // pred_check_branch
        %203 = sbr.rel (%p201) target = $region36
      $region35: #{tpu_custom_call.1} parent=5 // pred_region
        _
      $region36: #{tpu_custom_call.1} parent=5 // pred_fallthru
        _
      %p204 = scmp.le.s32.totalorder 1, %s14
      %p205 = scmp.lt.s32.totalorder %s14, 3
      %p206 = pnand %p204, %p205
      %p207 = pneg %p206
      // Predicated region
      $region37: #{tpu_custom_call.1} parent=5 // pred_check
        _
      $region38: #{tpu_custom_call.1} parent=5 // pred_check_branch
        %209 = sbr.rel (%p206) target = $region40
      $region39: #{tpu_custom_call.1} parent=5 // pred_region
        %s210 = ssub.s32 %s14, 1
        %s211 = smul.u32 2, %s24
        %p212 = scmp.lt.s32.totalorder %s211, 1
        %s213 = scalar_select %p212, %s211, 1
        %s214 = smul.addr %s213, 8
        %s215 = scalar_lea.vmem %s0, %s214
        %p216 = pneg %p52
        %p217 = pneg %p49
        %p218 = pneg %p73
        %p219 = pneg %p70
        %p220 = pneg %p94
        %p221 = pneg %p91
        %p222 = pneg %p115
        %p223 = pneg %p112
        %p224 = pneg %p136
        %p225 = pneg %p133
        %p226 = pneg %p164
        %p227 = pneg %p161
        %s228 = sand.u32 %s151, 1
        %s229 = scalar_lea.sflag [#allocation7], %s228
        %s230 = sand.u32 %s151, 1
        %s231 = smul.addr %s230, 16
        %s232 = scalar_lea.vmem [#allocation6], %s231
        %s233 = smul.u32 2, %s24
        %p234 = scmp.lt.s32.totalorder %s233, 1
        %s235 = scalar_select %p234, %s233, 1
        %s236 = smul.addr %s235, 8
        %s237 = scalar_lea.vmem %s0, %s236
        %s238 = smul.u32 2, %s24
        %s239 = smul.u32 %s24, %s23
        %s240 = smul.u32 2, %s239
        %p241 = scmp.eq.s32.totalorder %s23, 0
        %p242 = scmp.eq.s32.totalorder %s24, 0
        %p243 = pnand %p241, %p242
        %p244 = pneg %p243
        // Predicated region
        $region41: #{tpu_custom_call.1} parent=39 // pred_check
          _
        $region42: #{tpu_custom_call.1} parent=39 // pred_check_branch
          %246 = sbr.rel (%p243) target = $region44
        $region43: #{tpu_custom_call.1} parent=39 // pred_region
          %247 = vst [vmem:[#allocation2] sm:$0xff] 0.0
          %248 = vst [vmem:[#allocation3] sm:$0xff] 0.0
        $region44: #{tpu_custom_call.1} parent=39 // pred_fallthru
          _
        // Predicated region
        $region45: #{tpu_custom_call.1} parent=39 // pred_check
          %p249 = pneg %p241
        $region46: #{tpu_custom_call.1} parent=39 // pred_check_branch
          %251 = sbr.rel (%p249) target = $region48
        $region47: #{tpu_custom_call.1} parent=39 // pred_region
          %v252 = vld [vmem:[%s237] sm:$0xff]
          %v253 = vld [vmem:[%s237 + $0x8] sm:$0xff]
          %v254 = vld [vmem:[#allocation2] sm:$0xff]
          %v255 = vadd.f32 %v252, %v253
          %v256 = vadd.f32 %v254, %v255
          %257 = vst [vmem:[#allocation2] sm:$0xff] %v256
          %v258 = vld [vmem:[#allocation3] sm:$0xff]
          %v259 = vmul.f32 %v252, %v252
          %v260 = vmul.f32 %v253, %v253
          %v261 = vadd.f32 %v259, %v260
          %v262 = vadd.f32 %v258, %v261
          %263 = vst [vmem:[#allocation3] sm:$0xff] %v262
        $region48: #{tpu_custom_call.1} parent=39 // pred_fallthru
          _
        %p264 = scmp.eq.s32.totalorder %s23, 1
        %p265 = pnand %p264, %p242
        %p266 = pneg %p265
        // Predicated region
        $region49: #{tpu_custom_call.1} parent=39 // pred_check
          _
        $region50: #{tpu_custom_call.1} parent=39 // pred_check_branch
          %268 = sbr.rel (%p265) target = $region52
        $region51: #{tpu_custom_call.1} parent=39 // pred_region
          %v269 = vld [vmem:[%s3] sm:$0xff]
          %v270 = vld [vmem:[%s3 + $0x8] sm:$0xff]
          %v271 = vld [vmem:[%s3 + $0x10] sm:$0xff]
          %v272 = vld [vmem:[%s3 + $0x18] sm:$0xff]
          %v273 = vld [vmem:[%s3 + $0x20] sm:$0xff]
          %v274 = vld [vmem:[%s3 + $0x28] sm:$0xff]
          %v275 = vld [vmem:[%s3 + $0x30] sm:$0xff]
          %v276 = vld [vmem:[%s3 + $0x38] sm:$0xff]
          %v277 = vld [vmem:[%s3 + $0x40] sm:$0xff]
          %v278 = vld [vmem:[%s3 + $0x48] sm:$0xff]
          %v279 = vld [vmem:[%s3 + $0x50] sm:$0xff]
          %v280 = vld [vmem:[%s3 + $0x58] sm:$0xff]
          %v281 = vld [vmem:[%s3 + $0x60] sm:$0xff]
          %v282 = vld [vmem:[%s3 + $0x68] sm:$0xff]
          %v283 = vld [vmem:[%s3 + $0x70] sm:$0xff]
          %v284 = vld [vmem:[%s3 + $0x78] sm:$0xff]
          %v285 = vld [vmem:[%s4] sm:$0xff]
          %v286 = vld [vmem:[#allocation2] sm:$0xff]
          %287 = vmatprep.subr.mxu0 0.0
          %288 = vmatpush1.msra.mxu0 %v269
          %289 = vmatprep.subr.mxu0 0.0
          %290 = vmatpush1.msra.mxu0 %v270
          %291 = vmatprep.subr.mxu0 0.0
          %292 = vmatpush1.msra.mxu0 %v271
          %293 = vmatprep.subr.mxu0 0.0
          %294 = vmatpush1.msra.mxu0 %v272
          %295 = vmatprep.subr.mxu0 0.0
          %296 = vmatpush1.msra.mxu0 %v273
          %297 = vmatprep.subr.mxu0 0.0
          %298 = vmatpush1.msra.mxu0 %v274
          %299 = vmatprep.subr.mxu0 0.0
          %300 = vmatpush1.msra.mxu0 %v275
          %301 = vmatprep.subr.mxu0 0.0
          %302 = vmatpush1.msra.mxu0 %v276
          %303 = vmatprep.subr.mxu0 0.0
          %304 = vmatpush1.msra.mxu0 %v277
          %305 = vmatprep.subr.mxu0 0.0
          %306 = vmatpush1.msra.mxu0 %v278
          %307 = vmatprep.subr.mxu0 0.0
          %308 = vmatpush1.msra.mxu0 %v279
          %309 = vmatprep.subr.mxu0 0.0
          %310 = vmatpush1.msra.mxu0 %v280
          %311 = vmatprep.subr.mxu0 0.0
          %312 = vmatpush1.msra.mxu0 %v281
          %313 = vmatprep.subr.mxu0 0.0
          %314 = vmatpush1.msra.mxu0 %v282
          %315 = vmatprep.subr.mxu0 0.0
          %316 = vmatpush1.msra.mxu0 %v283
          %317 = vmatprep.subr.mxu0 0.0
          %318 = vmatpush1.msra.mxu0 %v284
          %319 = vmatprep.subr.mxu0 0.0
          %320 = vmatpush1.msra.mxu0 0.0
          %321 = vmatprep.subr.mxu0 0.0
          %322 = vmatpush1.msra.mxu0 0.0
          %323 = vmatprep.subr.mxu0 0.0
          %324 = vmatpush1.msra.mxu0 0.0
          %325 = vmatprep.subr.mxu0 0.0
          %326 = vmatpush1.msra.mxu0 0.0
          %327 = vmatprep.subr.mxu0 0.0
          %328 = vmatpush1.msra.mxu0 0.0
          %329 = vmatprep.subr.mxu0 0.0
          %330 = vmatpush1.msra.mxu0 0.0
          %331 = vmatprep.subr.mxu0 0.0
          %332 = vmatpush1.msra.mxu0 0.0
          %333 = vmatprep.subr.mxu0 0.0
          %334 = vmatpush1.msra.mxu0 0.0
          %335 = vmatprep.subr.mxu0 0.0
          %336 = vmatpush1.msra.mxu0 0.0
          %337 = vmatprep.subr.mxu0 0.0
          %338 = vmatpush1.msra.mxu0 0.0
          %339 = vmatprep.subr.mxu0 0.0
          %340 = vmatpush1.msra.mxu0 0.0
          %341 = vmatprep.subr.mxu0 0.0
          %342 = vmatpush1.msra.mxu0 0.0
          %343 = vmatprep.subr.mxu0 0.0
          %344 = vmatpush1.msra.mxu0 0.0
          %345 = vmatprep.subr.mxu0 0.0
          %346 = vmatpush1.msra.mxu0 0.0
          %347 = vmatprep.subr.mxu0 0.0
          %348 = vmatpush1.msra.mxu0 0.0
          %349 = vmatprep.subr.mxu0 0.0
          %350 = vmatpush1.msra.mxu0 0.0
          %351 = vmatprep.mubr.f32.mxu0 0.0
          %352 = vmatmul.mubr.f32.gmra.mrb[0].mxu0 %v286
          %v353 = vpop.f32.mrb[0].mxu0
          %v354 = vadd.f32 0.0, %v353
          %v355 = vpop.f32.mrb[0].mxu0
          %356 = vdwg.mxu0
          %vm357 = vcmask 64512
          %v359 = vsel %vm357, %v354, 0
          %361 = vmatprep.subr.mxu0 0.0
          %362 = vmatpush1.msra.mxu0 %v285
          %363 = vmatprep.subr.mxu0 0.0
          %364 = vmatpush1.msra.mxu0 0.0
          %365 = vmatprep.subr.mxu0 0.0
          %366 = vmatpush1.msra.mxu0 0.0
          %367 = vmatprep.subr.mxu0 0.0
          %368 = vmatpush1.msra.mxu0 0.0
          %369 = vmatprep.subr.mxu0 0.0
          %370 = vmatpush1.msra.mxu0 0.0
          %371 = vmatprep.subr.mxu0 0.0
          %372 = vmatpush1.msra.mxu0 0.0
          %373 = vmatprep.subr.mxu0 0.0
          %374 = vmatpush1.msra.mxu0 0.0
          %375 = vmatprep.subr.mxu0 0.0
          %376 = vmatpush1.msra.mxu0 0.0
          %377 = vmatprep.subr.mxu0 0.0
          %378 = vmatpush1.msra.mxu0 0.0
          %379 = vmatprep.subr.mxu0 0.0
          %380 = vmatpush1.msra.mxu0 0.0
          %381 = vmatprep.subr.mxu0 0.0
          %382 = vmatpush1.msra.mxu0 0.0
          %383 = vmatprep.subr.mxu0 0.0
          %384 = vmatpush1.msra.mxu0 0.0
          %385 = vmatprep.subr.mxu0 0.0
          %386 = vmatpush1.msra.mxu0 0.0
          %387 = vmatprep.subr.mxu0 0.0
          %388 = vmatpush1.msra.mxu0 0.0
          %389 = vmatprep.subr.mxu0 0.0
          %390 = vmatpush1.msra.mxu0 0.0
          %391 = vmatprep.subr.mxu0 0.0
          %392 = vmatpush1.msra.mxu0 0.0
          %393 = vmatprep.subr.mxu0 0.0
          %394 = vmatpush1.msra.mxu0 0.0
          %395 = vmatprep.subr.mxu0 0.0
          %396 = vmatpush1.msra.mxu0 0.0
          %397 = vmatprep.subr.mxu0 0.0
          %398 = vmatpush1.msra.mxu0 0.0
          %399 = vmatprep.subr.mxu0 0.0
          %400 = vmatpush1.msra.mxu0 0.0
          %401 = vmatprep.subr.mxu0 0.0
          %402 = vmatpush1.msra.mxu0 0.0
          %403 = vmatprep.subr.mxu0 0.0
          %404 = vmatpush1.msra.mxu0 0.0
          %405 = vmatprep.subr.mxu0 0.0
          %406 = vmatpush1.msra.mxu0 0.0
          %407 = vmatprep.subr.mxu0 0.0
          %408 = vmatpush1.msra.mxu0 0.0
          %409 = vmatprep.subr.mxu0 0.0
          %410 = vmatpush1.msra.mxu0 0.0
          %411 = vmatprep.subr.mxu0 0.0
          %412 = vmatpush1.msra.mxu0 0.0
          %413 = vmatprep.subr.mxu0 0.0
          %414 = vmatpush1.msra.mxu0 0.0
          %415 = vmatprep.subr.mxu0 0.0
          %416 = vmatpush1.msra.mxu0 0.0
          %417 = vmatprep.subr.mxu0 0.0
          %418 = vmatpush1.msra.mxu0 0.0
          %419 = vmatprep.subr.mxu0 0.0
          %420 = vmatpush1.msra.mxu0 0.0
          %421 = vmatprep.subr.mxu0 0.0
          %422 = vmatpush1.msra.mxu0 0.0
          %423 = vmatprep.subr.mxu0 0.0
          %424 = vmatpush1.msra.mxu0 0.0
          %425 = vmatprep.mubr.f32.mxu0 0.0
          %426 = vmatmul.mubr.f32.gmra.mrb[0].mxu0 %v359
          %v427 = vpop.f32.mrb[0].mxu0
          %v428 = vadd.f32 0.0, %v427
          %v429 = vpop.f32.mrb[0].mxu0
          %430 = vdwg.mxu0
          %v431 = vld [vmem:[#allocation3] sm:$0xff]
          %432 = vmatprep.subr.mxu0 0.0
          %433 = vmatpush1.msra.mxu0 %v269
          %434 = vmatprep.subr.mxu0 0.0
          %435 = vmatpush1.msra.mxu0 %v270
          %436 = vmatprep.subr.mxu0 0.0
          %437 = vmatpush1.msra.mxu0 %v271
          %438 = vmatprep.subr.mxu0 0.0
          %439 = vmatpush1.msra.mxu0 %v272
          %440 = vmatprep.subr.mxu0 0.0
          %441 = vmatpush1.msra.mxu0 %v273
          %442 = vmatprep.subr.mxu0 0.0
          %443 = vmatpush1.msra.mxu0 %v274
          %444 = vmatprep.subr.mxu0 0.0
          %445 = vmatpush1.msra.mxu0 %v275
          %446 = vmatprep.subr.mxu0 0.0
          %447 = vmatpush1.msra.mxu0 %v276
          %448 = vmatprep.subr.mxu0 0.0
          %449 = vmatpush1.msra.mxu0 %v277
          %450 = vmatprep.subr.mxu0 0.0
          %451 = vmatpush1.msra.mxu0 %v278
          %452 = vmatprep.subr.mxu0 0.0
          %453 = vmatpush1.msra.mxu0 %v279
          %454 = vmatprep.subr.mxu0 0.0
          %455 = vmatpush1.msra.mxu0 %v280
          %456 = vmatprep.subr.mxu0 0.0
          %457 = vmatpush1.msra.mxu0 %v281
          %458 = vmatprep.subr.mxu0 0.0
          %459 = vmatpush1.msra.mxu0 %v282
          %460 = vmatprep.subr.mxu0 0.0
          %461 = vmatpush1.msra.mxu0 %v283
          %462 = vmatprep.subr.mxu0 0.0
          %463 = vmatpush1.msra.mxu0 %v284
          %464 = vmatprep.subr.mxu0 0.0
          %465 = vmatpush1.msra.mxu0 0.0
          %466 = vmatprep.subr.mxu0 0.0
          %467 = vmatpush1.msra.mxu0 0.0
          %468 = vmatprep.subr.mxu0 0.0
          %469 = vmatpush1.msra.mxu0 0.0
          %470 = vmatprep.subr.mxu0 0.0
          %471 = vmatpush1.msra.mxu0 0.0
          %472 = vmatprep.subr.mxu0 0.0
          %473 = vmatpush1.msra.mxu0 0.0
          %474 = vmatprep.subr.mxu0 0.0
          %475 = vmatpush1.msra.mxu0 0.0
          %476 = vmatprep.subr.mxu0 0.0
          %477 = vmatpush1.msra.mxu0 0.0
          %478 = vmatprep.subr.mxu0 0.0
          %479 = vmatpush1.msra.mxu0 0.0
          %480 = vmatprep.subr.mxu0 0.0
          %481 = vmatpush1.msra.mxu0 0.0
          %482 = vmatprep.subr.mxu0 0.0
          %483 = vmatpush1.msra.mxu0 0.0
          %484 = vmatprep.subr.mxu0 0.0
          %485 = vmatpush1.msra.mxu0 0.0
          %486 = vmatprep.subr.mxu0 0.0
          %487 = vmatpush1.msra.mxu0 0.0
          %488 = vmatprep.subr.mxu0 0.0
          %489 = vmatpush1.msra.mxu0 0.0
          %490 = vmatprep.subr.mxu0 0.0
          %491 = vmatpush1.msra.mxu0 0.0
          %492 = vmatprep.subr.mxu0 0.0
          %493 = vmatpush1.msra.mxu0 0.0
          %494 = vmatprep.subr.mxu0 0.0
          %495 = vmatpush1.msra.mxu0 0.0
          %496 = vmatprep.mubr.f32.mxu0 0.0
          %497 = vmatmul.mubr.f32.gmra.mrb[0].mxu0 %v431
          %v498 = vpop.f32.mrb[0].mxu0
          %v499 = vadd.f32 0.0, %v498
          %v500 = vpop.f32.mrb[0].mxu0
          %501 = vdwg.mxu0
          %v503 = vsel %vm357, %v499, 0
          %505 = vmatprep.subr.mxu0 0.0
          %506 = vmatpush1.msra.mxu0 %v285
          %507 = vmatprep.subr.mxu0 0.0
          %508 = vmatpush1.msra.mxu0 0.0
          %509 = vmatprep.subr.mxu0 0.0
          %510 = vmatpush1.msra.mxu0 0.0
          %511 = vmatprep.subr.mxu0 0.0
          %512 = vmatpush1.msra.mxu0 0.0
          %513 = vmatprep.subr.mxu0 0.0
          %514 = vmatpush1.msra.mxu0 0.0
          %515 = vmatprep.subr.mxu0 0.0
          %516 = vmatpush1.msra.mxu0 0.0
          %517 = vmatprep.subr.mxu0 0.0
          %518 = vmatpush1.msra.mxu0 0.0
          %519 = vmatprep.subr.mxu0 0.0
          %520 = vmatpush1.msra.mxu0 0.0
          %521 = vmatprep.subr.mxu0 0.0
          %522 = vmatpush1.msra.mxu0 0.0
          %523 = vmatprep.subr.mxu0 0.0
          %524 = vmatpush1.msra.mxu0 0.0
          %525 = vmatprep.subr.mxu0 0.0
          %526 = vmatpush1.msra.mxu0 0.0
          %527 = vmatprep.subr.mxu0 0.0
          %528 = vmatpush1.msra.mxu0 0.0
          %529 = vmatprep.subr.mxu0 0.0
          %530 = vmatpush1.msra.mxu0 0.0
          %531 = vmatprep.subr.mxu0 0.0
          %532 = vmatpush1.msra.mxu0 0.0
          %533 = vmatprep.subr.mxu0 0.0
          %534 = vmatpush1.msra.mxu0 0.0
          %535 = vmatprep.subr.mxu0 0.0
          %536 = vmatpush1.msra.mxu0 0.0
          %537 = vmatprep.subr.mxu0 0.0
          %538 = vmatpush1.msra.mxu0 0.0
          %539 = vmatprep.subr.mxu0 0.0
          %540 = vmatpush1.msra.mxu0 0.0
          %541 = vmatprep.subr.mxu0 0.0
          %542 = vmatpush1.msra.mxu0 0.0
          %543 = vmatprep.subr.mxu0 0.0
          %544 = vmatpush1.msra.mxu0 0.0
          %545 = vmatprep.subr.mxu0 0.0
          %546 = vmatpush1.msra.mxu0 0.0
          %547 = vmatprep.subr.mxu0 0.0
          %548 = vmatpush1.msra.mxu0 0.0
          %549 = vmatprep.subr.mxu0 0.0
          %550 = vmatpush1.msra.mxu0 0.0
          %551 = vmatprep.subr.mxu0 0.0
          %552 = vmatpush1.msra.mxu0 0.0
          %553 = vmatprep.subr.mxu0 0.0
          %554 = vmatpush1.msra.mxu0 0.0
          %555 = vmatprep.subr.mxu0 0.0
          %556 = vmatpush1.msra.mxu0 0.0
          %557 = vmatprep.subr.mxu0 0.0
          %558 = vmatpush1.msra.mxu0 0.0
          %559 = vmatprep.subr.mxu0 0.0
          %560 = vmatpush1.msra.mxu0 0.0
          %561 = vmatprep.subr.mxu0 0.0
          %562 = vmatpush1.msra.mxu0 0.0
          %563 = vmatprep.subr.mxu0 0.0
          %564 = vmatpush1.msra.mxu0 0.0
          %565 = vmatprep.subr.mxu0 0.0
          %566 = vmatpush1.msra.mxu0 0.0
          %567 = vmatprep.subr.mxu0 0.0
          %568 = vmatpush1.msra.mxu0 0.0
          %569 = vmatprep.mubr.f32.mxu0 0.0
          %570 = vmatmul.mubr.f32.gmra.mrb[0].mxu0 %v503
          %v571 = vpop.f32.mrb[0].mxu0
          %v572 = vadd.f32 0.0, %v571
          %v573 = vpop.f32.mrb[0].mxu0
          %574 = vdwg.mxu0
          %v575 = vrot.slane %v428, 4
          %v576 = vadd.f32 %v428, %v575
          %v577 = vrot.slane %v576, 2
          %v578 = vadd.f32 %v576, %v577
          %v579 = vrot.slane %v578, 1
          %v580 = vadd.f32 %v578, %v579
          %v581 = vmul.f32 %v580, 0.00390625
          %v582 = vrot.slane %v572, 4
          %v583 = vadd.f32 %v572, %v582
          %v584 = vrot.slane %v583, 2
          %v585 = vadd.f32 %v583, %v584
          %v586 = vrot.slane %v585, 1
          %v587 = vadd.f32 %v585, %v586
          %v588 = vmul.f32 %v587, 0.00390625
          %v589 = vmul.f32 %v581, %v581
          %v590 = vsub.f32 %v588, %v589
          %v591 = vmax.f32 %v590, 0.0
          %v592 = vld [vmem:[%s1] sm:$0x1]
          %v593 = vadd.f32 %v591, 1e-05
          %v594 = vrsqrt.pop %v593
          %v595 = vmul.f32 %v592, %v594
          %596 = vst [vmem:[#allocation4] sm:$0x1] %v595
          %v597 = vld [vmem:[%s2] sm:$0x1]
          %v598 = vmul.f32 %v581, %v595
          %v599 = vsub.f32 %v597, %v598
          %600 = vst [vmem:[#allocation5] sm:$0x1] %v599
        $region52: #{tpu_custom_call.1} parent=39 // pred_fallthru
          _
        // Predicated region
        $region53: #{tpu_custom_call.1} parent=39 // pred_check
          %p601 = pneg %p264
        $region54: #{tpu_custom_call.1} parent=39 // pred_check_branch
          %603 = sbr.rel (%p601) target = $region56
        $region55: #{tpu_custom_call.1} parent=39 // pred_region
          %v604 = vld [vmem:[%s237] sm:$0xff]
          %v605 = vld [vmem:[%s237 + $0x8] sm:$0xff]
          %v606 = vld [vmem:[#allocation4] sm:$0x1]
          %v608 = vlaneseq
          %v609 = vshrl.u32 %v608, 7
          %v610 = vsub.s32 0, %v609
          %v611 = vrot.slane %v606, %v610
          %v613 = vmul.f32 %v604, %v611
          %v614 = vmul.f32 %v605, %v611
          %v615 = vld [vmem:[#allocation5] sm:$0x1]
          %v617 = vlaneseq
          %v618 = vshrl.u32 %v617, 7
          %v619 = vsub.s32 0, %v618
          %v620 = vrot.slane %v615, %v619
          %v622 = vadd.f32 %v613, %v620
          %v623 = vadd.f32 %v614, %v620
          %624 = vst [vmem:[%s232] sm:$0xff] %v622
          %625 = vst [vmem:[%s232 + $0x8] sm:$0xff] %v623
        $region56: #{tpu_custom_call.1} parent=39 // pred_fallthru
          _
        %s626 = sand.u32 %s151, 1
        %s627 = scalar_lea.sflag [#allocation7], %s626
        %s628 = sand.u32 %s151, 1
        %s629 = smul.addr %s628, 16
        %s630 = scalar_lea.vmem [#allocation6], %s629
        // Predicated region
        $region57: #{tpu_custom_call.1} parent=39 // pred_check
          %p631 = pneg %p161
        $region58: #{tpu_custom_call.1} parent=39 // pred_check_branch
          %633 = sbr.rel (%p631) target = $region60
        $region59: #{tpu_custom_call.1} parent=39 // pred_region
          %s634 = smul.u32 %s24, %s23
          %s635 = smul.u32 2, %s634
          %s637 = ssub.s32 256, 256
          %638 = vsyncadd %s627, %s637
          %s639 = smul.addr %s635, 128
          %s640 = scalar_lea.hbm %s5, %s639
          %s641 = sshll.u32 %s630, 4
          %s642 = int_to_ptr.vmem [resolvable:$true] %s641
          %647 = dma.vmem_to_hbm [thread:$0]  %s642, 256, %s640, %s627, 128, 128, 8
        $region60: #{tpu_custom_call.1} parent=39 // pred_fallthru
          _
      $region40: #{tpu_custom_call.1} parent=5 // pred_fallthru
        _
      %p648 = scmp.le.s32.totalorder 2, %s14
      // Predicated region
      $region61: #{tpu_custom_call.1} parent=5 // pred_check
        %p649 = pneg %p648
      $region62: #{tpu_custom_call.1} parent=5 // pred_check_branch
        %651 = sbr.rel (%p649) target = $region64
      $region63: #{tpu_custom_call.1} parent=5 // pred_region
        %s652 = ssub.s32 %s14, 2
        // Predicated region
        $region65: #{tpu_custom_call.1} parent=63 // pred_check
          %p653 = pneg %p167
        $region66: #{tpu_custom_call.1} parent=63 // pred_check_branch
          %655 = sbr.rel (%p653) target = $region68
        $region67: #{tpu_custom_call.1} parent=63 // pred_region
          %s656 = sand.u32 %s152, 1
          %s657 = scalar_lea.sflag [#allocation7], %s656
          %s658 = sand.u32 %s152, 1
          %s659 = smul.addr %s658, 16
          %s660 = scalar_lea.vmem [#allocation6], %s659
          %661 = dma.done %s657, 256
        $region68: #{tpu_custom_call.1} parent=63 // pred_fallthru
          _
      $region64: #{tpu_custom_call.1} parent=5 // pred_fallthru
        _
    $region6: #{tpu_custom_call.1} parent=1 // loop_footer
      %s18 = sadd.s32 1, %s14
    $region7: #{tpu_custom_call.1} parent=1 // loop_footer_branch
      %13 = sbr.rel target = $region3
    $region8: #{tpu_custom_call.1} parent=1 // loop_exit
      _
    %662 = vsyncpa [#allocation7], 1
    %s663 = scalar_lea.sflag [#allocation7], 1
    %664 = vsyncpa %s663, 1

</llo_original>
